<compile_context>
chip_gen: v5e
topology: v5e:2x2
jax: 0.10.0
libtpu: 0.0.40
codegen_flags: <defaults>
</compile_context>

<pallas_src>
import math

import jax
import jax.numpy as jnp
from jax import lax
from jax.experimental import pallas as pl
from jax.experimental.pallas import tpu as pltpu


_INV_SQRT2 = 1.0 / math.sqrt(2.0)


def _cdiv(a, b):
    return -(-a // b)


def _round_up(x, m):
    return _cdiv(x, m) * m


def _itemsize(dt):
    return jnp.dtype(dt).itemsize


# ---------------------------------------------------------------------------
# Kernels
# ---------------------------------------------------------------------------
def _gelu_exact(h):
    # Exact erf-based GELU (PyTorch nn.GELU default).  erf/mul run on the
    # VPU/EUP and are hidden under the MXU for ViT-class feature sizes.
    return 0.5 * h * (1.0 + lax.erf(h * _INV_SQRT2))


def _mlp_resident_kernel(x_ref, w1_ref, b1_ref, w2_ref, b2_ref, o_ref):
    """Weights fully VMEM-resident: grid=(nM,), one step per row tile."""
    h = jnp.dot(x_ref[...], w1_ref[...], preferred_element_type=jnp.float32)
    h = h + b1_ref[...]                       # (1, H_pad) f32 broadcast
    h = _gelu_exact(h)
    out = jnp.dot(h.astype(w2_ref.dtype), w2_ref[...],
                  preferred_element_type=jnp.float32)
    o_ref[...] = (out + b2_ref[...]).astype(o_ref.dtype)


def _mlp_chunked_kernel(x_ref, w1_ref, b1_ref, w2_ref, b2_ref, o_ref, acc_ref):
    """Hidden dim chunked on grid axis 1 ("arbitrary") with f32 accumulator."""
    j = pl.program_id(1)

    @pl.when(j == 0)
    def _():
        # Fold the fc2 bias into the accumulator init (saves the epilogue add).
        acc_ref[...] = jnp.broadcast_to(b2_ref[...], acc_ref.shape)

    h = jnp.dot(x_ref[...], w1_ref[...], preferred_element_type=jnp.float32)
    h = h + b1_ref[...]                       # (1, TH) f32 broadcast
    h = _gelu_exact(h)
    acc_ref[...] += jnp.dot(h.astype(w2_ref.dtype), w2_ref[...],
                            preferred_element_type=jnp.float32)

    @pl.when(j == pl.num_programs(1) - 1)
    def _():
        o_ref[...] = acc_ref[...].astype(o_ref.dtype)


# ---------------------------------------------------------------------------
# Parameter preparation (padding + optional bf16 cast, done ONCE at init)
# ---------------------------------------------------------------------------
def prepare_mlp_params(w1, b1, w2, b2, *, th_max=1024, lane_multiple=128,
                       mxu_dtype=None):
    """Pad weights/biases to lane-dense shapes and (optionally) cast to the
    MXU dtype.  w1: (Cin, H); b1: (H,); w2: (H, Cout); b2: (Cout,).

    lane_multiple=256 can be used on v6e/v7x (256x256 MXU) when feature dims
    are awkward multiples of 128; 128 is always correct.
    Zero padding is mathematically inert for this MLP (GELU(0)=0, padded
    weight rows/cols are zero) and padded outputs are sliced off.
    """
    Cin, H = w1.shape
    Cout = w2.shape[1]

    g = lane_multiple
    Cin_pad = _round_up(Cin, g)
    Cout_pad = _round_up(Cout, g)

    # Chunk-count-first derivation: caps padding overshoot at one granule.
    th_cap = max(g, _round_up(th_max, g))
    nH = _cdiv(_round_up(H, g), th_cap)
    TH = _round_up(_cdiv(H, nH), g)
    H_pad = nH * TH

    w_dtype = mxu_dtype if mxu_dtype is not None else w1.dtype
    w1_p = jnp.pad(w1, ((0, Cin_pad - Cin), (0, H_pad - H))).astype(w_dtype)
    w2_p = jnp.pad(w2, ((0, H_pad - H), (0, Cout_pad - Cout))).astype(w_dtype)
    b1_p = jnp.pad(b1.astype(jnp.float32), (0, H_pad - H)).reshape(1, H_pad)
    b2_p = jnp.pad(b2.astype(jnp.float32),
                   (0, Cout_pad - Cout)).reshape(1, Cout_pad)

    return dict(
        w1=w1_p, b1=b1_p, w2=w2_p, b2=b2_p,
        in_features=Cin, hidden_features=H, out_features=Cout,
        cin_pad=Cin_pad, h_pad=H_pad, cout_pad=Cout_pad,
        th=TH, nh=nH, mxu_dtype=mxu_dtype,
    )


# ---------------------------------------------------------------------------
# Tiling / VMEM budgeting helpers
# ---------------------------------------------------------------------------
def _row_tiling(M, tm_cap, min_tiles):
    tm_cap = max(8, _round_up(tm_cap, 8))
    M8 = _round_up(M, 8)
    nM = _cdiv(M8, tm_cap)
    nM = max(nM, min(min_tiles, _cdiv(M8, 8)))   # v7x: keep both TCs busy
    TM = _round_up(_cdiv(M, nM), 8)
    return nM, TM, nM * TM


def _resident_vmem_bytes(TM, prep, x_bytes, out_bytes):
    Cin_pad, H_pad, Cout_pad = prep["cin_pad"], prep["h_pad"], prep["cout_pad"]
    w_bytes = _itemsize(prep["w1"].dtype)
    weights = 2 * (Cin_pad * H_pad + H_pad * Cout_pad) * w_bytes  # double-buffered
    biases = 2 * (H_pad + Cout_pad) * 4
    x_tile = 2 * TM * Cin_pad * x_bytes
    o_tile = 2 * TM * Cout_pad * out_bytes
    interm = 2 * TM * H_pad * 4          # f32 hidden activation scratch
    return weights + biases + x_tile + o_tile + interm


def _chunked_vmem_bytes(TM, prep, x_bytes, out_bytes):
    Cin_pad, Cout_pad, TH = prep["cin_pad"], prep["cout_pad"], prep["th"]
    w_bytes = _itemsize(prep["w1"].dtype)
    weights = 2 * (Cin_pad * TH + TH * Cout_pad) * w_bytes
    biases = 2 * (TH + Cout_pad) * 4
    x_tile = 2 * TM * Cin_pad * x_bytes
    o_tile = 2 * TM * Cout_pad * out_bytes
    acc = TM * Cout_pad * 4
    interm = 2 * TM * TH * 4
    return weights + biases + x_tile + o_tile + acc + interm


# ---------------------------------------------------------------------------
# Forward wrapper
# ---------------------------------------------------------------------------
def mlp_pallas(x, prep, *, tm_max=1024, min_m_tiles=1,
               vmem_budget_bytes=56 * 1024 * 1024, force_resident=None):
    """x: (M, Cin) -> (M, Cout).  `prep` from prepare_mlp_params().

    vmem_budget_bytes: 56 MiB is safe on all generations (v7x has 64 MiB/TC);
    v5e/v6e users may raise it toward ~100 MiB for larger resident tiles.
    min_m_tiles=2 keeps both v7x TensorCores busy for small-batch inference.
    force_resident: None=auto (VMEM-budget driven), True/False to force a path.
    """
    M, Cin = x.shape
    assert Cin == prep["in_features"]
    Cin_pad, H_pad, Cout_pad = prep["cin_pad"], prep["h_pad"], prep["cout_pad"]
    TH, nH = prep["th"], prep["nh"]
    Cout = prep["out_features"]
    w1_p, b1_p, w2_p, b2_p = prep["w1"], prep["b1"], prep["w2"], prep["b2"]

    out_dtype = x.dtype
    comp_dtype = prep["mxu_dtype"] if prep["mxu_dtype"] is not None else x.dtype
    x_bytes, out_bytes = _itemsize(comp_dtype), _itemsize(out_dtype)

    # Candidate row-tile caps: tm_max, tm_max/2, ... down to 256.
    cap = max(8, _round_up(tm_max, 8))
    tm_caps = [cap]
    while cap > 256:
        cap = max(256, _round_up(cap // 2, 8))
        tm_caps.append(cap)

    limit = int(vmem_budget_bytes * 0.85)   # headroom for compiler internals

    # Prefer fully VMEM-resident weights (fetched once for the whole grid).
    resident_tiling = None
    if force_resident is not False:
        for c in tm_caps:
            tiling = _row_tiling(M, c, min_m_tiles)
            if force_resident or _resident_vmem_bytes(tiling[1], prep,
                                                      x_bytes, out_bytes) <= limit:
                resident_tiling = tiling
                break

    if resident_tiling is not None:
        nM, TM, M_pad = resident_tiling
    else:
        chosen = None
        for c in tm_caps:
            tiling = _row_tiling(M, c, min_m_tiles)
            if _chunked_vmem_bytes(tiling[1], prep, x_bytes, out_bytes) <= limit:
                chosen = tiling
                break
        nM, TM, M_pad = chosen if chosen is not None else tiling

    # Activation: cast for the MXU, pad only when actually needed.
    x_c = x.astype(comp_dtype) if x.dtype != comp_dtype else x
    if M_pad != M or Cin_pad != Cin:
        x_c = jnp.pad(x_c, ((0, M_pad - M), (0, Cin_pad - Cin)))

    vmem_limit = max(int(vmem_budget_bytes), 32 * 1024 * 1024)

    if resident_tiling is not None:
        # Constant index maps for W1/W2/b1/b2 -> DMA'd from HBM exactly once.
        # NOTE(v7x): pipeline_mode=pl.Buffered(1) on the weight specs would
        # halve their VMEM footprint (no double buffer); not applied here to
        # stay maximally compile-portable.
        out_p = pl.pallas_call(
            _mlp_resident_kernel,
            out_shape=jax.ShapeDtypeStruct((M_pad, Cout_pad), out_dtype),
            grid_spec=pltpu.PrefetchScalarGridSpec(
                num_scalar_prefetch=0,
                grid=(nM,),
                in_specs=[
                    pl.BlockSpec((TM, Cin_pad), lambda i: (i, 0)),     # x tile
                    pl.BlockSpec((Cin_pad, H_pad), lambda i: (0, 0)),  # W1
                    pl.BlockSpec((1, H_pad), lambda i: (0, 0)),        # b1
                    pl.BlockSpec((H_pad, Cout_pad), lambda i: (0, 0)), # W2
                    pl.BlockSpec((1, Cout_pad), lambda i: (0, 0)),     # b2
                ],
                out_specs=pl.BlockSpec((TM, Cout_pad), lambda i: (i, 0)),
            ),
            compiler_params=pltpu.CompilerParams(
                dimension_semantics=("parallel",),
                vmem_limit_bytes=vmem_limit,
            ),
        )(x_c, w1_p, b1_p, w2_p, b2_p)
    else:
        # Fallback: hidden dim chunked, f32 accumulator across the j axis.
        out_p = pl.pallas_call(
            _mlp_chunked_kernel,
            out_shape=jax.ShapeDtypeStruct((M_pad, Cout_pad), out_dtype),
            grid_spec=pltpu.PrefetchScalarGridSpec(
                num_scalar_prefetch=0,
                grid=(nM, nH),
                in_specs=[
                    pl.BlockSpec((TM, Cin_pad), lambda i, j: (i, 0)),     # x
                    pl.BlockSpec((Cin_pad, TH), lambda i, j: (0, j)),     # W1 chunk
                    pl.BlockSpec((1, TH), lambda i, j: (0, j)),           # b1 chunk
                    pl.BlockSpec((TH, Cout_pad), lambda i, j: (j, 0)),    # W2 chunk
                    pl.BlockSpec((1, Cout_pad), lambda i, j: (0, 0)),     # b2
                ],
                out_specs=pl.BlockSpec((TM, Cout_pad), lambda i, j: (i, 0)),
                scratch_shapes=[pltpu.VMEM((TM, Cout_pad), jnp.float32)],
            ),
            compiler_params=pltpu.CompilerParams(
                dimension_semantics=("parallel", "arbitrary"),
                vmem_limit_bytes=vmem_limit,
            ),
        )(x_c, w1_p, b1_p, w2_p, b2_p)

    if M_pad != M or Cout_pad != Cout:
        out_p = out_p[:M, :Cout]
    return out_p


def mlp_forward(x_tokens, prep, **kwargs):
    """x_tokens: (B, N, in_features) ViT-style token tensor."""
    B, N, Cin = x_tokens.shape
    out = mlp_pallas(x_tokens.reshape(B * N, Cin), prep, **kwargs)
    return out.reshape(B, N, prep["out_features"])


def init_params(key, in_features, hidden_features, out_features,
                dtype=jnp.float32):
    # Deterministic synthetic init (mimics nn.Linear's uniform(-1/sqrt(fan_in))).
    k1, k2, k3, k4 = jax.random.split(key, 4)
    lim1 = 1.0 / math.sqrt(in_features)
    lim2 = 1.0 / math.sqrt(hidden_features)
    w1 = jax.random.uniform(k1, (in_features, hidden_features), dtype,
                            minval=-lim1, maxval=lim1)
    b1 = jax.random.uniform(k2, (hidden_features,), dtype,
                            minval=-lim1, maxval=lim1)
    w2 = jax.random.uniform(k3, (hidden_features, out_features), dtype,
                            minval=-lim2, maxval=lim2)
    b2 = jax.random.uniform(k4, (out_features,), dtype,
                            minval=-lim2, maxval=lim2)
    return w1, b1, w2, b2


if __name__ == "__main__":
    key = jax.random.PRNGKey(0)

    def ref_mlp(x, w1, b1, w2, b2):
        h = x @ w1 + b1
        h = 0.5 * h * (1.0 + lax.erf(h / math.sqrt(2.0)))
        return h @ w2 + b2   # dropout(p=0) is the identity

    # --- Config A: f32, resident-weights path -----------------------------
    B, N = 2, 8
    in_f, hid_f, out_f = 32, 64, 32
    kx, kp = jax.random.split(key)
    x = jax.random.normal(kx, (B, N, in_f), jnp.float32)
    params = init_params(kp, in_f, hid_f, out_f)
    prep = prepare_mlp_params(*params)
    out = mlp_forward(x, prep)
    jax.block_until_ready(out)
    ref = ref_mlp(x, *params)
    assert out.shape == (B, N, out_f)
    assert jnp.allclose(out, ref, atol=1e-5, rtol=1e-5)

    # --- Config B: chunked-H fallback path (2 hidden chunks, ragged Cout) --
    in2, hid2, out2_f = 32, 256, 48
    k2x, k2p = jax.random.split(kp)
    x2 = jax.random.normal(k2x, (B, N, in2), jnp.float32)
    params2 = init_params(k2p, in2, hid2, out2_f)
    prep2 = prepare_mlp_params(*params2, th_max=128)
    out2 = mlp_pallas(x2.reshape(B * N, in2), prep2,
                      force_resident=False).reshape(B, N, out2_f)
    jax.block_until_ready(out2)
    ref2 = ref_mlp(x2, *params2)
    assert out2.shape == (B, N, out2_f)
    assert jnp.allclose(out2, ref2, atol=1e-5, rtol=1e-5)

    # --- Config C: bf16 MXU operands with f32 accumulation / f32 I/O -------
    prep_bf16 = prepare_mlp_params(*params, mxu_dtype=jnp.bfloat16)
    out3 = mlp_forward(x, prep_bf16)
    jax.block_until_ready(out3)
    assert out3.dtype == x.dtype
    assert jnp.allclose(out3, ref, atol=3e-2, rtol=3e-2)

    print("KERNEL_OK")
</pallas_src>

<mosaic_0001>
module attributes {stable_mosaic.version = 11 : i64} {
  func.func @_mlp_resident_kernel(%arg0: i32, %arg1: memref<16x128xf32, #tpu.memory_space<vmem>>, %arg2: memref<128x128xf32, #tpu.memory_space<vmem>>, %arg3: memref<1x128xf32, #tpu.memory_space<vmem>>, %arg4: memref<128x128xf32, #tpu.memory_space<vmem>>, %arg5: memref<1x128xf32, #tpu.memory_space<vmem>>, %arg6: memref<16x128xf32, #tpu.memory_space<vmem>>) attributes {dimension_semantics = [#tpu.dimension_semantics<parallel>], iteration_bounds = array<i64: 1>, scalar_prefetch = 0 : i64, scratch_operands = 0 : i64, tpu.core_type = #tpu.core_type<tc>, window_params = [{transform_indices = @transform_0, window_bounds = array<i64: 16, 128>}, {pipeline_mode = #tpu.pipeline_mode<synchronous>, transform_indices = @transform_1, window_bounds = array<i64: 128, 128>}, {pipeline_mode = #tpu.pipeline_mode<synchronous>, transform_indices = @transform_2, window_bounds = array<i64: 1, 128>}, {pipeline_mode = #tpu.pipeline_mode<synchronous>, transform_indices = @transform_3, window_bounds = array<i64: 128, 128>}, {pipeline_mode = #tpu.pipeline_mode<synchronous>, transform_indices = @transform_4, window_bounds = array<i64: 1, 128>}, {transform_indices = @transform_5, window_bounds = array<i64: 16, 128>}]} {
    %c0 = arith.constant 0 : index
    %c0_0 = arith.constant 0 : index
    %0 = vector.load %arg1[%c0, %c0_0] : memref<16x128xf32, #tpu.memory_space<vmem>>, vector<16x128xf32>
    %c0_1 = arith.constant 0 : index
    %c0_2 = arith.constant 0 : index
    %1 = vector.load %arg2[%c0_1, %c0_2] : memref<128x128xf32, #tpu.memory_space<vmem>>, vector<128x128xf32>
    %cst = arith.constant dense<0.000000e+00> : vector<16x128xf32>
    %2 = tpu.matmul %0, %1, %cst {dimension_numbers = #tpu.dot_dimension_numbers<[1], [0], [0], [1], [0, 0, 1, 1], [], []>} : vector<16x128xf32>, vector<128x128xf32>, vector<16x128xf32> -> vector<16x128xf32>
    %c0_3 = arith.constant 0 : index
    %c0_4 = arith.constant 0 : index
    %3 = vector.load %arg3[%c0_3, %c0_4] : memref<1x128xf32, #tpu.memory_space<vmem>>, vector<1x128xf32>
    %4 = vector.broadcast %3 : vector<1x128xf32> to vector<16x128xf32>
    %5 = arith.addf %2, %4 : vector<16x128xf32>
    %cst_5 = arith.constant 5.000000e-01 : f32
    %6 = vector.broadcast %cst_5 : f32 to vector<16x128xf32>
    %7 = arith.mulf %6, %5 : vector<16x128xf32>
    %cst_6 = arith.constant 0.707106769 : f32
    %8 = vector.broadcast %cst_6 : f32 to vector<16x128xf32>
    %9 = arith.mulf %5, %8 : vector<16x128xf32>
    %10 = math.erf %9 : vector<16x128xf32>
    %cst_7 = arith.constant 1.000000e+00 : f32
    %11 = vector.broadcast %cst_7 : f32 to vector<16x128xf32>
    %12 = arith.addf %11, %10 : vector<16x128xf32>
    %13 = arith.mulf %7, %12 : vector<16x128xf32>
    %c0_8 = arith.constant 0 : index
    %c0_9 = arith.constant 0 : index
    %14 = vector.load %arg4[%c0_8, %c0_9] : memref<128x128xf32, #tpu.memory_space<vmem>>, vector<128x128xf32>
    %cst_10 = arith.constant dense<0.000000e+00> : vector<16x128xf32>
    %15 = tpu.matmul %13, %14, %cst_10 {dimension_numbers = #tpu.dot_dimension_numbers<[1], [0], [0], [1], [0, 0, 1, 1], [], []>} : vector<16x128xf32>, vector<128x128xf32>, vector<16x128xf32> -> vector<16x128xf32>
    %c0_11 = arith.constant 0 : index
    %c0_12 = arith.constant 0 : index
    %16 = vector.load %arg5[%c0_11, %c0_12] : memref<1x128xf32, #tpu.memory_space<vmem>>, vector<1x128xf32>
    %17 = vector.broadcast %16 : vector<1x128xf32> to vector<16x128xf32>
    %18 = arith.addf %15, %17 : vector<16x128xf32>
    %c0_13 = arith.constant 0 : index
    %c0_14 = arith.constant 0 : index
    %19 = vector.load %arg6[%c0_13, %c0_14] : memref<16x128xf32, #tpu.memory_space<vmem>>, vector<16x128xf32>
    tpu.vector_store %arg6[%c0_13, %c0_14], %18 {strides = array<i32>} : memref<16x128xf32, #tpu.memory_space<vmem>>, vector<16x128xf32>,
    return
  }
  func.func @transform_0(%arg0: i32) -> (i32, i32) {
    %c0_i32 = arith.constant 0 : i32
    %c0_i32_0 = arith.constant 0 : i32
    return %arg0, %c0_i32 : i32, i32
  }
  func.func @transform_1(%arg0: i32) -> (i32, i32) {
    %c0_i32 = arith.constant 0 : i32
    %c0_i32_0 = arith.constant 0 : i32
    %c0_i32_1 = arith.constant 0 : i32
    return %c0_i32, %c0_i32_0 : i32, i32
  }
  func.func @transform_2(%arg0: i32) -> (i32, i32) {
    %c0_i32 = arith.constant 0 : i32
    %c0_i32_0 = arith.constant 0 : i32
    %c0_i32_1 = arith.constant 0 : i32
    return %c0_i32, %c0_i32_0 : i32, i32
  }
  func.func @transform_3(%arg0: i32) -> (i32, i32) {
    %c0_i32 = arith.constant 0 : i32
    %c0_i32_0 = arith.constant 0 : i32
    %c0_i32_1 = arith.constant 0 : i32
    return %c0_i32, %c0_i32_0 : i32, i32
  }
  func.func @transform_4(%arg0: i32) -> (i32, i32) {
    %c0_i32 = arith.constant 0 : i32
    %c0_i32_0 = arith.constant 0 : i32
    %c0_i32_1 = arith.constant 0 : i32
    return %c0_i32, %c0_i32_0 : i32, i32
  }
  func.func @transform_5(%arg0: i32) -> (i32, i32) {
    %c0_i32 = arith.constant 0 : i32
    %c0_i32_0 = arith.constant 0 : i32
    return %arg0, %c0_i32 : i32, i32
  }
}

</mosaic_0001>

<llo_original>
// kernel: tpu_custom_call.1
$region0: #{tpu_custom_call.1}
  #allocation0 [shape = 'u32[]', space=smem, size = 0x4, offset = 0x4, fixed_abs, tag = 'smem constant byte address 0x4 - core index']
  #allocation1 [shape = 'u32[72,128]{1,0:T(1,128)}', space=vmem, size = 0x9000, scoped, tag = 'internal scratch']
  %s0 = inlined_call_operand.hbm [shape: f32[16,128], index: 0, kind: input, shape index: {}]
  %s1 = inlined_call_operand.hbm [shape: f32[128,128], index: 1, kind: input, shape index: {}]
  %s2 = inlined_call_operand.vmem [shape: f32[1,128], index: 2, kind: input, shape index: {}]
  %s3 = inlined_call_operand.hbm [shape: f32[128,128], index: 3, kind: input, shape index: {}]
  %s4 = inlined_call_operand.vmem [shape: f32[1,128], index: 4, kind: input, shape index: {}]
  %s5 = inlined_call_operand.hbm [shape: f32[16,128], index: 5, kind: output, shape index: {}]
  %s6 = sld [smem:[#allocation0]]
  $region42: #{tpu_custom_call.1} parent=0
    _
  %s8 = ssub.s32 1, %s6
  %s9 = scalar_select 0, %s8, %s6
  $region1: #{tpu_custom_call.1} parent=0
    #allocation2 [shape = 'u8[8192]{0}', space=vmem, size = 0x2000, scoped, tag = 'input window, operand 0, single buffered']
    #allocation3 [shape = 's32[1]{0}', space=sflag, size = 0x4, scoped, tag = 'scoped memory for tpu_custom_call.1']
    #allocation4 [shape = 's32[1]{0}', space=sflag, size = 0x4, scoped, tag = 'scoped memory for tpu_custom_call.1']
    #allocation5 [shape = 'u8[65536]{0}', space=vmem, size = 0x10000, scoped, tag = 'input window, operand 1, single buffered']
    #allocation6 [shape = 's32[1]{0}', space=sflag, size = 0x4, scoped, tag = 'scoped memory for tpu_custom_call.1']
    #allocation7 [shape = 'u8[65536]{0}', space=vmem, size = 0x10000, scoped, tag = 'input window, operand 3, single buffered']
    #allocation8 [shape = 'u8[8192]{0}', space=vmem, size = 0x2000, scoped, tag = 'output window, operand 0, single buffered']
    %10 = vsyncpa [#allocation3], 0
    %11 = vsyncpa [#allocation6], 0
    %12 = vsyncpa [#allocation4], 0
    // Predicated region
    $region2: #{tpu_custom_call.1} parent=1 // pred_check
      _
    $region3: #{tpu_custom_call.1} parent=1 // pred_check_branch
      %14 = sbr.rel (0) target = $region5
    $region4: #{tpu_custom_call.1} parent=1 // pred_region
      %16 = vsyncadd [#allocation3], 0
      %s17 = sshll.u32 %s0, 4
      %s18 = int_to_ptr.hbm [resolvable:$true] %s17
      %s19 = sshll.u32 [#allocation2], 4
      %s20 = int_to_ptr.vmem [resolvable:$true] %s19
      %25 = dma.hbm_to_vmem [thread:$0]  %s18, 256, %s20, [#allocation3], 128, 128, 8
    $region5: #{tpu_custom_call.1} parent=1 // pred_fallthru
      _
    // Predicated region
    $region6: #{tpu_custom_call.1} parent=1 // pred_check
      _
    $region7: #{tpu_custom_call.1} parent=1 // pred_check_branch
      %27 = sbr.rel (0) target = $region9
    $region8: #{tpu_custom_call.1} parent=1 // pred_region
      %29 = vsyncadd [#allocation6], 0
      %s30 = sshll.u32 %s1, 4
      %s31 = int_to_ptr.hbm [resolvable:$true] %s30
      %s32 = sshll.u32 [#allocation5], 4
      %s33 = int_to_ptr.vmem [resolvable:$true] %s32
      %38 = dma.hbm_to_vmem [thread:$0]  %s31, 2048, %s33, [#allocation6], 128, 128, 8
    $region9: #{tpu_custom_call.1} parent=1 // pred_fallthru
      _
    // Predicated region
    $region10: #{tpu_custom_call.1} parent=1 // pred_check
      _
    $region11: #{tpu_custom_call.1} parent=1 // pred_check_branch
      %40 = sbr.rel (0) target = $region13
    $region12: #{tpu_custom_call.1} parent=1 // pred_region
      _
    $region13: #{tpu_custom_call.1} parent=1 // pred_fallthru
      _
    // Predicated region
    $region14: #{tpu_custom_call.1} parent=1 // pred_check
      _
    $region15: #{tpu_custom_call.1} parent=1 // pred_check_branch
      %42 = sbr.rel (0) target = $region17
    $region16: #{tpu_custom_call.1} parent=1 // pred_region
      %44 = vsyncadd [#allocation6], 0
      %s45 = sshll.u32 %s3, 4
      %s46 = int_to_ptr.hbm [resolvable:$true] %s45
      %s47 = sshll.u32 [#allocation7], 4
      %s48 = int_to_ptr.vmem [resolvable:$true] %s47
      %53 = dma.hbm_to_vmem [thread:$0]  %s46, 2048, %s48, [#allocation6], 128, 128, 8
    $region17: #{tpu_custom_call.1} parent=1 // pred_fallthru
      _
    // Predicated region
    $region18: #{tpu_custom_call.1} parent=1 // pred_check
      _
    $region19: #{tpu_custom_call.1} parent=1 // pred_check_branch
      %55 = sbr.rel (0) target = $region21
    $region20: #{tpu_custom_call.1} parent=1 // pred_region
      _
    $region21: #{tpu_custom_call.1} parent=1 // pred_fallthru
      _
    // Predicated region
    $region22: #{tpu_custom_call.1} parent=1 // pred_check
      _
    $region23: #{tpu_custom_call.1} parent=1 // pred_check_branch
      %57 = sbr.rel (0) target = $region25
    $region24: #{tpu_custom_call.1} parent=1 // pred_region
      %59 = dma.done [#allocation3], 256
    $region25: #{tpu_custom_call.1} parent=1 // pred_fallthru
      _
    // Predicated region
    $region26: #{tpu_custom_call.1} parent=1 // pred_check
      _
    $region27: #{tpu_custom_call.1} parent=1 // pred_check_branch
      %61 = sbr.rel (0) target = $region29
    $region28: #{tpu_custom_call.1} parent=1 // pred_region
      %63 = dma.done [#allocation6], 2048
    $region29: #{tpu_custom_call.1} parent=1 // pred_fallthru
      _
    // Predicated region
    $region30: #{tpu_custom_call.1} parent=1 // pred_check
      _
    $region31: #{tpu_custom_call.1} parent=1 // pred_check_branch
      %65 = sbr.rel (0) target = $region33
    $region32: #{tpu_custom_call.1} parent=1 // pred_region
      %67 = dma.done [#allocation6], 2048
    $region33: #{tpu_custom_call.1} parent=1 // pred_fallthru
      _
    %v68 = vld [vmem:[#allocation2] sm:$0xff]
    %v69 = vld [vmem:[#allocation2 + $0x8] sm:$0xff]
    %v70 = vld [vmem:[#allocation5] sm:$0xff]
    %v71 = vld [vmem:[#allocation5 + $0x8] sm:$0xff]
    %v72 = vld [vmem:[#allocation5 + $0x10] sm:$0xff]
    %v73 = vld [vmem:[#allocation5 + $0x18] sm:$0xff]
    %v74 = vld [vmem:[#allocation5 + $0x20] sm:$0xff]
    %v75 = vld [vmem:[#allocation5 + $0x28] sm:$0xff]
    %v76 = vld [vmem:[#allocation5 + $0x30] sm:$0xff]
    %v77 = vld [vmem:[#allocation5 + $0x38] sm:$0xff]
    %v78 = vld [vmem:[#allocation5 + $0x40] sm:$0xff]
    %v79 = vld [vmem:[#allocation5 + $0x48] sm:$0xff]
    %v80 = vld [vmem:[#allocation5 + $0x50] sm:$0xff]
    %v81 = vld [vmem:[#allocation5 + $0x58] sm:$0xff]
    %v82 = vld [vmem:[#allocation5 + $0x60] sm:$0xff]
    %v83 = vld [vmem:[#allocation5 + $0x68] sm:$0xff]
    %v84 = vld [vmem:[#allocation5 + $0x70] sm:$0xff]
    %v85 = vld [vmem:[#allocation5 + $0x78] sm:$0xff]
    %v86 = vld [vmem:[%s2] sm:$0x1]
    %v88 = vperm.slane %v86, 0
    %90 = vmatpush.msra.mxu0 %v85
    %91 = vmatpush.msra.mxu0 %v84
    %92 = vmatpush.msra.mxu0 %v83
    %93 = vmatpush.msra.mxu0 %v82
    %94 = vmatpush.msra.mxu0 %v81
    %95 = vmatpush.msra.mxu0 %v80
    %96 = vmatpush.msra.mxu0 %v79
    %97 = vmatpush.msra.mxu0 %v78
    %98 = vmatpush.msra.mxu0 %v77
    %99 = vmatpush.msra.mxu0 %v76
    %100 = vmatpush.msra.mxu0 %v75
    %101 = vmatpush.msra.mxu0 %v74
    %102 = vmatpush.msra.mxu0 %v73
    %103 = vmatpush.msra.mxu0 %v72
    %104 = vmatpush.msra.mxu0 %v71
    %105 = vmatpush.msra.mxu0 %v70
    %106 = vmatmul.f32.gmra.mxu0 %v68
    %v107 = vpop.f32.mrf.mxu0
    %v108 = vadd.f32 %v88, %v107
    %109 = vmatmul.f32.gmra.mxu0 %v69
    %v110 = vpop.f32.mrf.mxu0
    %v111 = vadd.f32 %v88, %v110
    %112 = vdwg.mxu0
    %v113 = vmul.f32 %v108, 0.5
    %v114 = vmul.f32 %v111, 0.5
    %v115 = vmul.f32 %v108, 0.70710677
    %v116 = vmul.f32 %v111, 0.70710677
    %v117 = vmul.f32 %v115, %v115
    %v118 = vmin.f32 16.0, %v117
    %v119 = vmul.f32 %v118, 2.1237322e-06
    %v120 = vadd.f32 %v119, 0.00028619796
    %v121 = vmul.f32 %v118, %v120
    %v122 = vadd.f32 %v121, 0.0036580483
    %v123 = vmul.f32 %v118, %v122
    %v124 = vadd.f32 %v123, 0.05243302
    %v125 = vmul.f32 %v118, %v124
    %v126 = vadd.f32 %v125, 0.18741608
    %v127 = vmul.f32 %v118, %v126
    %v128 = vadd.f32 %v127, 1.1283791
    %v129 = vmul.f32 %v115, %v128
    %v130 = vmul.f32 %v118, 3.8918573e-05
    %v131 = vadd.f32 %v130, 0.001143296
    %v132 = vmul.f32 %v118, %v131
    %v133 = vadd.f32 %v132, 0.014752088
    %v134 = vmul.f32 %v118, %v133
    %v135 = vadd.f32 %v134, 0.112945676
    %v136 = vmul.f32 %v118, %v135
    %v137 = vadd.f32 %v136, 0.4994258
    %v138 = vmul.f32 %v118, %v137
    %v139 = vadd.f32 %v138, 1.0
    %v140 = vrcp.pop %v139
    %v141 = vmul.f32 %v139, %v140
    %v142 = vsub.f32 1.0, %v141
    %v143 = vmul.f32 %v140, %v142
    %v144 = vadd.f32 %v140, %v143
    %vm145 = vweird.f32 %v139
    %vm146 = vweird.f32 %v140
    %vm147 = vmor %vm145, %vm146
    %v148 = vsel %vm147, %v140, %v144
    %v149 = vand.u32 2147483647, %v139
    %vm150 = vcmp.eq.f32.partialorder %v149, 8.507059e+37
    %v151 = vand.u32 %v139, 2147483648
    %v152 = vor.u32 1.1754944e-38, %v151
    %v153 = vsel %vm150, %v152, %v148
    %v154 = vmul.f32 %v129, %v153
    %v155 = vmin.f32 %v154, 1.0
    %v156 = vmax.f32 %v155, -1.0
    %v157 = vmul.f32 %v116, %v116
    %v158 = vmin.f32 16.0, %v157
    %v159 = vmul.f32 %v158, 2.1237322e-06
    %v160 = vadd.f32 %v159, 0.00028619796
    %v161 = vmul.f32 %v158, %v160
    %v162 = vadd.f32 %v161, 0.0036580483
    %v163 = vmul.f32 %v158, %v162
    %v164 = vadd.f32 %v163, 0.05243302
    %v165 = vmul.f32 %v158, %v164
    %v166 = vadd.f32 %v165, 0.18741608
    %v167 = vmul.f32 %v158, %v166
    %v168 = vadd.f32 %v167, 1.1283791
    %v169 = vmul.f32 %v116, %v168
    %v170 = vmul.f32 %v158, 3.8918573e-05
    %v171 = vadd.f32 %v170, 0.001143296
    %v172 = vmul.f32 %v158, %v171
    %v173 = vadd.f32 %v172, 0.014752088
    %v174 = vmul.f32 %v158, %v173
    %v175 = vadd.f32 %v174, 0.112945676
    %v176 = vmul.f32 %v158, %v175
    %v177 = vadd.f32 %v176, 0.4994258
    %v178 = vmul.f32 %v158, %v177
    %v179 = vadd.f32 %v178, 1.0
    %v180 = vrcp.pop %v179
    %v181 = vmul.f32 %v179, %v180
    %v182 = vsub.f32 1.0, %v181
    %v183 = vmul.f32 %v180, %v182
    %v184 = vadd.f32 %v180, %v183
    %vm185 = vweird.f32 %v179
    %vm186 = vweird.f32 %v180
    %vm187 = vmor %vm185, %vm186
    %v188 = vsel %vm187, %v180, %v184
    %v189 = vand.u32 2147483647, %v179
    %vm190 = vcmp.eq.f32.partialorder %v189, 8.507059e+37
    %v191 = vand.u32 %v179, 2147483648
    %v192 = vor.u32 1.1754944e-38, %v191
    %v193 = vsel %vm190, %v192, %v188
    %v194 = vmul.f32 %v169, %v193
    %v195 = vmin.f32 %v194, 1.0
    %v196 = vmax.f32 %v195, -1.0
    %v197 = vadd.f32 %v156, 1.0
    %v198 = vadd.f32 %v196, 1.0
    %v199 = vmul.f32 %v113, %v197
    %v200 = vmul.f32 %v114, %v198
    %v201 = vld [vmem:[#allocation7] sm:$0xff]
    %v202 = vld [vmem:[#allocation7 + $0x8] sm:$0xff]
    %v203 = vld [vmem:[#allocation7 + $0x10] sm:$0xff]
    %v204 = vld [vmem:[#allocation7 + $0x18] sm:$0xff]
    %v205 = vld [vmem:[#allocation7 + $0x20] sm:$0xff]
    %v206 = vld [vmem:[#allocation7 + $0x28] sm:$0xff]
    %v207 = vld [vmem:[#allocation7 + $0x30] sm:$0xff]
    %v208 = vld [vmem:[#allocation7 + $0x38] sm:$0xff]
    %v209 = vld [vmem:[#allocation7 + $0x40] sm:$0xff]
    %v210 = vld [vmem:[#allocation7 + $0x48] sm:$0xff]
    %v211 = vld [vmem:[#allocation7 + $0x50] sm:$0xff]
    %v212 = vld [vmem:[#allocation7 + $0x58] sm:$0xff]
    %v213 = vld [vmem:[#allocation7 + $0x60] sm:$0xff]
    %v214 = vld [vmem:[#allocation7 + $0x68] sm:$0xff]
    %v215 = vld [vmem:[#allocation7 + $0x70] sm:$0xff]
    %v216 = vld [vmem:[#allocation7 + $0x78] sm:$0xff]
    %v217 = vld [vmem:[%s4] sm:$0x1]
    %v219 = vperm.slane %v217, 0
    %221 = vmatpush.msra.mxu0 %v216
    %222 = vmatpush.msra.mxu0 %v215
    %223 = vmatpush.msra.mxu0 %v214
    %224 = vmatpush.msra.mxu0 %v213
    %225 = vmatpush.msra.mxu0 %v212
    %226 = vmatpush.msra.mxu0 %v211
    %227 = vmatpush.msra.mxu0 %v210
    %228 = vmatpush.msra.mxu0 %v209
    %229 = vmatpush.msra.mxu0 %v208
    %230 = vmatpush.msra.mxu0 %v207
    %231 = vmatpush.msra.mxu0 %v206
    %232 = vmatpush.msra.mxu0 %v205
    %233 = vmatpush.msra.mxu0 %v204
    %234 = vmatpush.msra.mxu0 %v203
    %235 = vmatpush.msra.mxu0 %v202
    %236 = vmatpush.msra.mxu0 %v201
    %237 = vmatmul.f32.gmra.mxu0 %v199
    %v238 = vpop.f32.mrf.mxu0
    %v239 = vadd.f32 %v219, %v238
    %240 = vmatmul.f32.gmra.mxu0 %v200
    %v241 = vpop.f32.mrf.mxu0
    %v242 = vadd.f32 %v219, %v241
    %243 = vdwg.mxu0
    %244 = vst [vmem:[#allocation8] sm:$0xff] %v239
    %245 = vst [vmem:[#allocation8 + $0x8] sm:$0xff] %v242
    // Predicated region
    $region34: #{tpu_custom_call.1} parent=1 // pred_check
      _
    $region35: #{tpu_custom_call.1} parent=1 // pred_check_branch
      %247 = sbr.rel (0) target = $region37
    $region36: #{tpu_custom_call.1} parent=1 // pred_region
      %249 = vsyncadd [#allocation4], 0
      %s250 = sshll.u32 [#allocation8], 4
      %s251 = int_to_ptr.vmem [resolvable:$true] %s250
      %s252 = sshll.u32 %s5, 4
      %s253 = int_to_ptr.hbm [resolvable:$true] %s252
      %258 = dma.vmem_to_hbm [thread:$0]  %s251, 256, %s253, [#allocation4], 128, 128, 8
    $region37: #{tpu_custom_call.1} parent=1 // pred_fallthru
      _
    // Predicated region
    $region38: #{tpu_custom_call.1} parent=1 // pred_check
      _
    $region39: #{tpu_custom_call.1} parent=1 // pred_check_branch
      %260 = sbr.rel (0) target = $region41
    $region40: #{tpu_custom_call.1} parent=1 // pred_region
      %262 = dma.done [#allocation4], 256
    $region41: #{tpu_custom_call.1} parent=1 // pred_fallthru
      _
    %263 = vsyncpa [#allocation3], 1
    %264 = vsyncpa [#allocation6], 1
    %265 = vsyncpa [#allocation4], 1

</llo_original>
